<compile_context>
chip_gen: v5e
topology: v5e:2x2
jax: 0.10.0
libtpu: 0.0.40
codegen_flags: <defaults>
</compile_context>

<pallas_src>
import functools

import jax
import jax.numpy as jnp
from jax.experimental import pallas as pl
from jax.experimental.pallas import tpu as pltpu

MIN_STD = 0.01
LN_EPS = 1e-5
LANE = 128


def _round_up(x, m):
    return ((x + m - 1) // m) * m


def _pad_to(a, shape):
    pads = [(0, t - s) for s, t in zip(a.shape, shape)]
    if all(p == (0, 0) for p in pads):
        return a
    return jnp.pad(a, pads)


def latent_encoder_kernel(
    xy_ref,                                         # (BT*Np, feat)
    w1_ref, b1_ref,                                 # encoder layer 1 (fused x|y)
    w2_ref, b2_ref, w3_ref, b3_ref,                 # encoder layers 2, 3
    ws_ref, bs_ref,                                 # secondlast_layer
    wh_ref, bh_ref,                                 # fused mean | l_sigma heads
    out_ref,                                        # (BT, 2*Lp): [mu | sigma]
    *, n_seq, n_valid_seq, h_valid, lp, mm_dtype,
):
    rows = xy_ref.shape[0]
    bt = rows // n_seq
    inv_h = 1.0 / h_valid

    def mm(a, w_ref):
        return jnp.dot(a.astype(mm_dtype), w_ref[...],
                       preferred_element_type=jnp.float32)

    def ln_relu(h):
        # Unmasked LayerNorm over the padded width Hp.  Valid because padded
        # weight/bias columns are exactly zero, so padded lanes of h are 0 and
        # sums over Hp equal sums over the true width H.  Padded lanes after
        # the normalize/ReLU hold garbage, but the next layer's padded weight
        # ROWS are zero so it never contributes.
        hp = h.shape[-1]
        m = jnp.sum(h, axis=-1, keepdims=True) * inv_h
        d = h - m
        v = (jnp.sum(d * d, axis=-1, keepdims=True)
             - float(hp - h_valid) * (m * m)) * inv_h
        v = jnp.maximum(v, 0.0)
        return jnp.maximum(d * jax.lax.rsqrt(v + LN_EPS), 0.0)

    # ----- encoder batch_MLP: Linear -> LN -> ReLU, Linear -> LN -> ReLU, Linear
    h = ln_relu(mm(xy_ref[...], w1_ref) + b1_ref[...])
    h = ln_relu(mm(h, w2_ref) + b2_ref[...])
    h = mm(h, w3_ref) + b3_ref[...]                 # (BT*Np, Hp)

    # ----- mean over the sequence (torch dim=1); reshape is layout-preserving
    # because Np % 8 == 0.
    hp = h.shape[-1]
    h3 = h.reshape(bt, n_seq, hp)
    if n_valid_seq == n_seq:
        mean_val = jnp.mean(h3, axis=1)             # (BT, Hp)
    else:
        seq_mask = jax.lax.broadcasted_iota(jnp.int32, h3.shape, 1) < n_valid_seq
        mean_val = jnp.sum(jnp.where(seq_mask, h3, 0.0), axis=1) * (1.0 / n_valid_seq)

    # ----- heads on the whole (BT, Hp) block (mean | l_sigma fused into one matmul)
    r = jnp.maximum(mm(mean_val, ws_ref) + bs_ref[...], 0.0)
    head = mm(r, wh_ref) + bh_ref[...]              # (BT, 2*Lp)

    mu = head[:, :lp]
    sigma = MIN_STD + (1.0 - MIN_STD) * jax.nn.sigmoid(0.5 * head[:, lp:])

    out_ref[:, :lp] = mu.astype(out_ref.dtype)
    out_ref[:, lp:] = sigma.astype(out_ref.dtype)


def _const_spec(shape):
    # Whole (small) array resident every grid step; constant index map so the
    # pipeline fetches it once and revisits the same VMEM block.
    return pl.BlockSpec(shape, lambda b: (0,) * len(shape))


def latent_encoder_forward(x, y, params, *, use_bf16=False, batch_tile=None):
    """Returns (mu, sigma), each of shape (B, latent_dim)."""
    x = x.astype(jnp.float32)
    y = y.astype(jnp.float32)
    B, N, x_dim = x.shape
    y_dim = y.shape[-1]
    feat = x_dim + y_dim
    H = params["w1"].shape[1]
    L = params["wm"].shape[1]

    # Lane-pad hidden/latent widths; prefer 256-multiples for big H (v6e/v7x MXU).
    Hp = _round_up(H, 256) if H >= 256 else _round_up(H, LANE)
    Lp = _round_up(L, LANE)
    Np = _round_up(N, 8)
    mm_dtype = jnp.bfloat16 if use_bf16 else jnp.float32

    # --- weights: fuse w1 (x|y) and the two heads (mean|l_sigma); zero-pad to
    # lane width.  (In production these would be pre-padded/cast once.)
    w1 = _pad_to(params["w1"], (feat, Hp)).astype(mm_dtype)
    b1 = _pad_to(params["b1"], (1, Hp))
    w2 = _pad_to(params["w2"], (Hp, Hp)).astype(mm_dtype)
    b2 = _pad_to(params["b2"], (1, Hp))
    w3 = _pad_to(params["w3"], (Hp, Hp)).astype(mm_dtype)
    b3 = _pad_to(params["b3"], (1, Hp))
    ws = _pad_to(params["ws"], (Hp, Hp)).astype(mm_dtype)
    bs = _pad_to(params["bs"], (1, Hp))
    wh = jnp.concatenate([_pad_to(params["wm"], (Hp, Lp)),
                          _pad_to(params["wl"], (Hp, Lp))], axis=1).astype(mm_dtype)
    bh = jnp.concatenate([_pad_to(params["bm"], (1, Lp)),
                          _pad_to(params["bl"], (1, Lp))], axis=1)
    weight_args = [w1, b1, w2, b2, w3, b3, ws, bs, wh, bh]

    # --- batch-tile size: ~8K folded rows per step to amortize per-step
    # overhead, capped so the (rows, Hp) f32 activation slab stays ~8 MiB
    # (safe on v7x's 64 MiB VMEM).  Prefer >=2 grid steps when the batch is
    # large enough (v7x has 2 TensorCores), keeping BT sublane-aligned.
    if batch_tile is None:
        rows_cap = min(8192, max(Np, (8 << 20) // (4 * Hp)))
        bt = max(1, rows_cap // Np)
        if bt >= B:
            bt = _round_up((B + 1) // 2, 8) if B >= 16 else B
        else:
            bt = max(8, (bt // 8) * 8)
        batch_tile = int(bt)
    BT = batch_tile
    Bp = _round_up(B, BT)

    # --- fused, flattened input (matches torch.cat([x, y], dim=-1) in forward).
    xy = jnp.concatenate([x, y], axis=-1)           # (B, N, feat)
    if Bp != B or Np != N:
        xy = jnp.pad(xy, ((0, Bp - B), (0, Np - N), (0, 0)))
    xy = xy.reshape(Bp * Np, feat)

    grid = (Bp // BT,)

    in_specs = [pl.BlockSpec((BT * Np, feat), lambda b: (b, 0))] + \
               [_const_spec(w.shape) for w in weight_args]
    out_shape = jax.ShapeDtypeStruct((Bp, 2 * Lp), jnp.float32)
    out_specs = pl.BlockSpec((BT, 2 * Lp), lambda b: (b, 0))

    # --- generation-aware VMEM limit: physical capacity minus pipeline headroom.
    try:
        vmem_cap = int(pltpu.get_tpu_info().vmem_capacity_bytes)
    except Exception:
        vmem_cap = 64 << 20
    vmem_limit = max(32 << 20, min(vmem_cap - (12 << 20), 112 << 20))

    rows_total = Bp * Np
    flops = int(2 * rows_total * Hp * (feat + 2 * Hp)
                + 2 * Bp * Hp * (Hp + 2 * Lp))
    transcendentals = int(2 * rows_total + Bp * Lp)
    bytes_accessed = int(
        4 * xy.size
        + sum(int(w.size) * w.dtype.itemsize for w in weight_args)
        + 4 * Bp * 2 * Lp
    )

    kernel = functools.partial(
        latent_encoder_kernel,
        n_seq=Np, n_valid_seq=N, h_valid=H, lp=Lp, mm_dtype=mm_dtype,
    )

    out = pl.pallas_call(
        kernel,
        out_shape=out_shape,
        grid_spec=pltpu.PrefetchScalarGridSpec(
            num_scalar_prefetch=0,
            grid=grid,
            in_specs=in_specs,
            out_specs=out_specs,
        ),
        compiler_params=pltpu.CompilerParams(
            dimension_semantics=("parallel",),
            vmem_limit_bytes=vmem_limit,
        ),
        cost_estimate=pl.CostEstimate(
            flops=flops,
            transcendentals=transcendentals,
            bytes_accessed=bytes_accessed,
        ),
    )(xy, *weight_args)

    mu = out[:B, :L]
    sigma = out[:B, Lp:Lp + L]
    return mu, sigma


def _ln_ref(h):
    m = jnp.mean(h, axis=-1, keepdims=True)
    d = h - m
    v = jnp.mean(d * d, axis=-1, keepdims=True)
    return d * jax.lax.rsqrt(v + LN_EPS)


def latent_encoder_reference(x, y, params):
    """Pure-JAX f32 reference of the same forward pass."""
    h = jnp.concatenate([x, y], axis=-1).astype(jnp.float32)
    h = jnp.maximum(_ln_ref(h @ params["w1"] + params["b1"]), 0.0)
    h = jnp.maximum(_ln_ref(h @ params["w2"] + params["b2"]), 0.0)
    h = h @ params["w3"] + params["b3"]
    mean_val = jnp.mean(h, axis=1)                              # (B, H)
    r = jnp.maximum(mean_val @ params["ws"] + params["bs"], 0.0)
    mu = r @ params["wm"] + params["bm"]
    log_scale = r @ params["wl"] + params["bl"]
    sigma = MIN_STD + (1.0 - MIN_STD) * jax.nn.sigmoid(0.5 * log_scale)
    return mu, sigma


def init_params(key, in_dim, hidden_dim, latent_dim):
    ks = jax.random.split(key, 6)

    def w(k, fan_in, fan_out):
        return (jax.random.normal(k, (fan_in, fan_out), jnp.float32)
                * (1.0 / jnp.sqrt(fan_in)))

    def b(fan_out):
        return jnp.zeros((1, fan_out), jnp.float32)

    return {
        "w1": w(ks[0], in_dim, hidden_dim),     "b1": b(hidden_dim),
        "w2": w(ks[1], hidden_dim, hidden_dim), "b2": b(hidden_dim),
        "w3": w(ks[2], hidden_dim, hidden_dim), "b3": b(hidden_dim),
        "ws": w(ks[3], hidden_dim, hidden_dim), "bs": b(hidden_dim),
        "wm": w(ks[4], hidden_dim, latent_dim), "bm": b(latent_dim),
        "wl": w(ks[5], hidden_dim, latent_dim), "bl": b(latent_dim),
    }


if __name__ == "__main__":
    B, N = 2, 8
    x_dim, y_dim = 2, 2
    hidden_dim, latent_dim = 32, 32

    key = jax.random.PRNGKey(0)
    kx, ky, kp = jax.random.split(key, 3)
    x = jax.random.normal(kx, (B, N, x_dim), jnp.float32)
    y = jax.random.normal(ky, (B, N, y_dim), jnp.float32)
    params = init_params(kp, x_dim + y_dim, hidden_dim, latent_dim)

    mu_ref, sigma_ref = latent_encoder_reference(x, y, params)

    # f32 matmul path (tight tolerance against the reference).
    fwd_f32 = jax.jit(functools.partial(latent_encoder_forward, use_bf16=False))
    mu, sigma = jax.block_until_ready(fwd_f32(x, y, params))
    assert mu.shape == (B, latent_dim) and sigma.shape == (B, latent_dim)
    assert jnp.allclose(mu, mu_ref, atol=1e-3, rtol=1e-3)
    assert jnp.allclose(sigma, sigma_ref, atol=1e-3, rtol=1e-3)
    assert bool(jnp.all(sigma > MIN_STD * 0.999))

    # bf16 matmul path (optional fast path) — loose tolerance vs f32 reference.
    fwd_bf16 = jax.jit(functools.partial(latent_encoder_forward, use_bf16=True))
    mu_b, sigma_b = jax.block_until_ready(fwd_bf16(x, y, params))
    assert mu_b.shape == (B, latent_dim) and sigma_b.shape == (B, latent_dim)
    assert bool(jnp.all(jnp.isfinite(mu_b))) and bool(jnp.all(jnp.isfinite(sigma_b)))
    assert jnp.allclose(mu_b, mu_ref, atol=1e-1, rtol=1e-1)
    assert jnp.allclose(sigma_b, sigma_ref, atol=1e-1, rtol=1e-1)

    print("KERNEL_OK")
</pallas_src>

<mosaic_0001>
module attributes {stable_mosaic.version = 11 : i64} {
  func.func @latent_encoder_kernel(%arg0: i32, %arg1: memref<16x4xf32, #tpu.memory_space<vmem>>, %arg2: memref<4x128xf32, #tpu.memory_space<vmem>>, %arg3: memref<1x128xf32, #tpu.memory_space<vmem>>, %arg4: memref<128x128xf32, #tpu.memory_space<vmem>>, %arg5: memref<1x128xf32, #tpu.memory_space<vmem>>, %arg6: memref<128x128xf32, #tpu.memory_space<vmem>>, %arg7: memref<1x128xf32, #tpu.memory_space<vmem>>, %arg8: memref<128x128xf32, #tpu.memory_space<vmem>>, %arg9: memref<1x128xf32, #tpu.memory_space<vmem>>, %arg10: memref<128x256xf32, #tpu.memory_space<vmem>>, %arg11: memref<1x256xf32, #tpu.memory_space<vmem>>, %arg12: memref<2x256xf32, #tpu.memory_space<vmem>>) attributes {dimension_semantics = [#tpu.dimension_semantics<parallel>], iteration_bounds = array<i64: 1>, scalar_prefetch = 0 : i64, scratch_operands = 0 : i64, tpu.core_type = #tpu.core_type<tc>, window_params = [{transform_indices = @transform_0, window_bounds = array<i64: 16, 4>}, {pipeline_mode = #tpu.pipeline_mode<synchronous>, transform_indices = @transform_1, window_bounds = array<i64: 4, 128>}, {pipeline_mode = #tpu.pipeline_mode<synchronous>, transform_indices = @transform_2, window_bounds = array<i64: 1, 128>}, {pipeline_mode = #tpu.pipeline_mode<synchronous>, transform_indices = @transform_3, window_bounds = array<i64: 128, 128>}, {pipeline_mode = #tpu.pipeline_mode<synchronous>, transform_indices = @transform_4, window_bounds = array<i64: 1, 128>}, {pipeline_mode = #tpu.pipeline_mode<synchronous>, transform_indices = @transform_5, window_bounds = array<i64: 128, 128>}, {pipeline_mode = #tpu.pipeline_mode<synchronous>, transform_indices = @transform_6, window_bounds = array<i64: 1, 128>}, {pipeline_mode = #tpu.pipeline_mode<synchronous>, transform_indices = @transform_7, window_bounds = array<i64: 128, 128>}, {pipeline_mode = #tpu.pipeline_mode<synchronous>, transform_indices = @transform_8, window_bounds = array<i64: 1, 128>}, {pipeline_mode = #tpu.pipeline_mode<synchronous>, transform_indices = @transform_9, window_bounds = array<i64: 128, 256>}, {pipeline_mode = #tpu.pipeline_mode<synchronous>, transform_indices = @transform_10, window_bounds = array<i64: 1, 256>}, {transform_indices = @transform_11, window_bounds = array<i64: 2, 256>}]} {
    %c0 = arith.constant 0 : index
    %c0_0 = arith.constant 0 : index
    %0 = vector.load %arg1[%c0, %c0_0] : memref<16x4xf32, #tpu.memory_space<vmem>>, vector<16x4xf32>
    %c0_1 = arith.constant 0 : index
    %c0_2 = arith.constant 0 : index
    %1 = vector.load %arg2[%c0_1, %c0_2] : memref<4x128xf32, #tpu.memory_space<vmem>>, vector<4x128xf32>
    %cst = arith.constant dense<0.000000e+00> : vector<16x128xf32>
    %2 = tpu.matmul %0, %1, %cst {dimension_numbers = #tpu.dot_dimension_numbers<[1], [0], [0], [1], [0, 0, 1, 1], [], []>} : vector<16x4xf32>, vector<4x128xf32>, vector<16x128xf32> -> vector<16x128xf32>
    %c0_3 = arith.constant 0 : index
    %c0_4 = arith.constant 0 : index
    %3 = vector.load %arg3[%c0_3, %c0_4] : memref<1x128xf32, #tpu.memory_space<vmem>>, vector<1x128xf32>
    %4 = vector.broadcast %3 : vector<1x128xf32> to vector<16x128xf32>
    %5 = arith.addf %2, %4 : vector<16x128xf32>
    %cst_5 = arith.constant dense<0.000000e+00> : vector<16xf32>
    %6 = vector.multi_reduction <add>, %5, %cst_5 [1] : vector<16x128xf32> to vector<16xf32>
    %7 = vector.shape_cast %6 : vector<16xf32> to vector<16x1xf32>
    %cst_6 = arith.constant 3.125000e-02 : f32
    %8 = vector.broadcast %cst_6 : f32 to vector<16x1xf32>
    %9 = arith.mulf %7, %8 : vector<16x1xf32>
    %10 = vector.broadcast %9 : vector<16x1xf32> to vector<16x128xf32>
    %11 = arith.subf %5, %10 : vector<16x128xf32>
    %12 = arith.mulf %11, %11 : vector<16x128xf32>
    %cst_7 = arith.constant dense<0.000000e+00> : vector<16xf32>
    %13 = vector.multi_reduction <add>, %12, %cst_7 [1] : vector<16x128xf32> to vector<16xf32>
    %14 = vector.shape_cast %13 : vector<16xf32> to vector<16x1xf32>
    %15 = arith.mulf %9, %9 : vector<16x1xf32>
    %cst_8 = arith.constant 9.600000e+01 : f32
    %16 = vector.broadcast %cst_8 : f32 to vector<16x1xf32>
    %17 = arith.mulf %16, %15 : vector<16x1xf32>
    %18 = arith.subf %14, %17 : vector<16x1xf32>
    %cst_9 = arith.constant 3.125000e-02 : f32
    %19 = vector.broadcast %cst_9 : f32 to vector<16x1xf32>
    %20 = arith.mulf %18, %19 : vector<16x1xf32>
    %cst_10 = arith.constant 0.000000e+00 : f32
    %21 = vector.broadcast %cst_10 : f32 to vector<16x1xf32>
    %22 = arith.maximumf %20, %21 : vector<16x1xf32>
    %cst_11 = arith.constant 9.99999974E-6 : f32
    %23 = vector.broadcast %cst_11 : f32 to vector<16x1xf32>
    %24 = arith.addf %22, %23 : vector<16x1xf32>
    %25 = math.rsqrt %24 : vector<16x1xf32>
    %26 = vector.broadcast %25 : vector<16x1xf32> to vector<16x128xf32>
    %27 = arith.mulf %11, %26 : vector<16x128xf32>
    %cst_12 = arith.constant 0.000000e+00 : f32
    %28 = vector.broadcast %cst_12 : f32 to vector<16x128xf32>
    %29 = arith.maximumf %27, %28 : vector<16x128xf32>
    %c0_13 = arith.constant 0 : index
    %c0_14 = arith.constant 0 : index
    %30 = vector.load %arg4[%c0_13, %c0_14] : memref<128x128xf32, #tpu.memory_space<vmem>>, vector<128x128xf32>
    %cst_15 = arith.constant dense<0.000000e+00> : vector<16x128xf32>
    %31 = tpu.matmul %29, %30, %cst_15 {dimension_numbers = #tpu.dot_dimension_numbers<[1], [0], [0], [1], [0, 0, 1, 1], [], []>} : vector<16x128xf32>, vector<128x128xf32>, vector<16x128xf32> -> vector<16x128xf32>
    %c0_16 = arith.constant 0 : index
    %c0_17 = arith.constant 0 : index
    %32 = vector.load %arg5[%c0_16, %c0_17] : memref<1x128xf32, #tpu.memory_space<vmem>>, vector<1x128xf32>
    %33 = vector.broadcast %32 : vector<1x128xf32> to vector<16x128xf32>
    %34 = arith.addf %31, %33 : vector<16x128xf32>
    %cst_18 = arith.constant dense<0.000000e+00> : vector<16xf32>
    %35 = vector.multi_reduction <add>, %34, %cst_18 [1] : vector<16x128xf32> to vector<16xf32>
    %36 = vector.shape_cast %35 : vector<16xf32> to vector<16x1xf32>
    %cst_19 = arith.constant 3.125000e-02 : f32
    %37 = vector.broadcast %cst_19 : f32 to vector<16x1xf32>
    %38 = arith.mulf %36, %37 : vector<16x1xf32>
    %39 = vector.broadcast %38 : vector<16x1xf32> to vector<16x128xf32>
    %40 = arith.subf %34, %39 : vector<16x128xf32>
    %41 = arith.mulf %40, %40 : vector<16x128xf32>
    %cst_20 = arith.constant dense<0.000000e+00> : vector<16xf32>
    %42 = vector.multi_reduction <add>, %41, %cst_20 [1] : vector<16x128xf32> to vector<16xf32>
    %43 = vector.shape_cast %42 : vector<16xf32> to vector<16x1xf32>
    %44 = arith.mulf %38, %38 : vector<16x1xf32>
    %cst_21 = arith.constant 9.600000e+01 : f32
    %45 = vector.broadcast %cst_21 : f32 to vector<16x1xf32>
    %46 = arith.mulf %45, %44 : vector<16x1xf32>
    %47 = arith.subf %43, %46 : vector<16x1xf32>
    %cst_22 = arith.constant 3.125000e-02 : f32
    %48 = vector.broadcast %cst_22 : f32 to vector<16x1xf32>
    %49 = arith.mulf %47, %48 : vector<16x1xf32>
    %cst_23 = arith.constant 0.000000e+00 : f32
    %50 = vector.broadcast %cst_23 : f32 to vector<16x1xf32>
    %51 = arith.maximumf %49, %50 : vector<16x1xf32>
    %cst_24 = arith.constant 9.99999974E-6 : f32
    %52 = vector.broadcast %cst_24 : f32 to vector<16x1xf32>
    %53 = arith.addf %51, %52 : vector<16x1xf32>
    %54 = math.rsqrt %53 : vector<16x1xf32>
    %55 = vector.broadcast %54 : vector<16x1xf32> to vector<16x128xf32>
    %56 = arith.mulf %40, %55 : vector<16x128xf32>
    %cst_25 = arith.constant 0.000000e+00 : f32
    %57 = vector.broadcast %cst_25 : f32 to vector<16x128xf32>
    %58 = arith.maximumf %56, %57 : vector<16x128xf32>
    %c0_26 = arith.constant 0 : index
    %c0_27 = arith.constant 0 : index
    %59 = vector.load %arg6[%c0_26, %c0_27] : memref<128x128xf32, #tpu.memory_space<vmem>>, vector<128x128xf32>
    %cst_28 = arith.constant dense<0.000000e+00> : vector<16x128xf32>
    %60 = tpu.matmul %58, %59, %cst_28 {dimension_numbers = #tpu.dot_dimension_numbers<[1], [0], [0], [1], [0, 0, 1, 1], [], []>} : vector<16x128xf32>, vector<128x128xf32>, vector<16x128xf32> -> vector<16x128xf32>
    %c0_29 = arith.constant 0 : index
    %c0_30 = arith.constant 0 : index
    %61 = vector.load %arg7[%c0_29, %c0_30] : memref<1x128xf32, #tpu.memory_space<vmem>>, vector<1x128xf32>
    %62 = vector.broadcast %61 : vector<1x128xf32> to vector<16x128xf32>
    %63 = arith.addf %60, %62 : vector<16x128xf32>
    %64 = vector.shape_cast %63 : vector<16x128xf32> to vector<2x8x128xf32>
    %cst_31 = arith.constant dense<0.000000e+00> : vector<2x128xf32>
    %65 = vector.multi_reduction <add>, %64, %cst_31 [1] : vector<2x8x128xf32> to vector<2x128xf32>
    %cst_32 = arith.constant 8.000000e+00 : f32
    %66 = vector.broadcast %cst_32 : f32 to vector<2x128xf32>
    %67 = arith.divf %65, %66 : vector<2x128xf32>
    %c0_33 = arith.constant 0 : index
    %c0_34 = arith.constant 0 : index
    %68 = vector.load %arg8[%c0_33, %c0_34] : memref<128x128xf32, #tpu.memory_space<vmem>>, vector<128x128xf32>
    %cst_35 = arith.constant dense<0.000000e+00> : vector<2x128xf32>
    %69 = tpu.matmul %67, %68, %cst_35 {dimension_numbers = #tpu.dot_dimension_numbers<[1], [0], [0], [1], [0, 0, 1, 1], [], []>} : vector<2x128xf32>, vector<128x128xf32>, vector<2x128xf32> -> vector<2x128xf32>
    %c0_36 = arith.constant 0 : index
    %c0_37 = arith.constant 0 : index
    %70 = vector.load %arg9[%c0_36, %c0_37] : memref<1x128xf32, #tpu.memory_space<vmem>>, vector<1x128xf32>
    %71 = vector.broadcast %70 : vector<1x128xf32> to vector<2x128xf32>
    %72 = arith.addf %69, %71 : vector<2x128xf32>
    %cst_38 = arith.constant 0.000000e+00 : f32
    %73 = vector.broadcast %cst_38 : f32 to vector<2x128xf32>
    %74 = arith.maximumf %72, %73 : vector<2x128xf32>
    %c0_39 = arith.constant 0 : index
    %c0_40 = arith.constant 0 : index
    %75 = vector.load %arg10[%c0_39, %c0_40] : memref<128x256xf32, #tpu.memory_space<vmem>>, vector<128x256xf32>
    %cst_41 = arith.constant dense<0.000000e+00> : vector<2x256xf32>
    %76 = tpu.matmul %74, %75, %cst_41 {dimension_numbers = #tpu.dot_dimension_numbers<[1], [0], [0], [1], [0, 0, 1, 1], [], []>} : vector<2x128xf32>, vector<128x256xf32>, vector<2x256xf32> -> vector<2x256xf32>
    %c0_42 = arith.constant 0 : index
    %c0_43 = arith.constant 0 : index
    %77 = vector.load %arg11[%c0_42, %c0_43] : memref<1x256xf32, #tpu.memory_space<vmem>>, vector<1x256xf32>
    %78 = vector.broadcast %77 : vector<1x256xf32> to vector<2x256xf32>
    %79 = arith.addf %76, %78 : vector<2x256xf32>
    %80 = vector.extract_strided_slice %79 {offsets = [0, 0], sizes = [2, 128], strides = [1, 1]} : vector<2x256xf32> to vector<2x128xf32>
    %81 = vector.extract_strided_slice %79 {offsets = [0, 128], sizes = [2, 128], strides = [1, 1]} : vector<2x256xf32> to vector<2x128xf32>
    %cst_44 = arith.constant 5.000000e-01 : f32
    %82 = vector.broadcast %cst_44 : f32 to vector<2x128xf32>
    %83 = arith.mulf %82, %81 : vector<2x128xf32>
    %84 = arith.negf %83 : vector<2x128xf32>
    %85 = math.exp %84 : vector<2x128xf32>
    %cst_45 = arith.constant 1.000000e+00 : f32
    %86 = vector.broadcast %cst_45 : f32 to vector<2x128xf32>
    %87 = arith.addf %86, %85 : vector<2x128xf32>
    %88 = arith.divf %86, %87 : vector<2x128xf32>
    %cst_46 = arith.constant 9.900000e-01 : f32
    %89 = vector.broadcast %cst_46 : f32 to vector<2x128xf32>
    %90 = arith.mulf %89, %88 : vector<2x128xf32>
    %cst_47 = arith.constant 0.00999999977 : f32
    %91 = vector.broadcast %cst_47 : f32 to vector<2x128xf32>
    %92 = arith.addf %91, %90 : vector<2x128xf32>
    %c0_48 = arith.constant 0 : index
    %c0_49 = arith.constant 0 : index
    %93 = vector.load %arg12[%c0_48, %c0_49] : memref<2x256xf32, #tpu.memory_space<vmem>>, vector<2x128xf32>
    tpu.vector_store %arg12[%c0_48, %c0_49], %80 {strides = array<i32>} : memref<2x256xf32, #tpu.memory_space<vmem>>, vector<2x128xf32>,
    %c0_50 = arith.constant 0 : index
    %c128 = arith.constant 128 : index
    %94 = vector.load %arg12[%c0_50, %c128] : memref<2x256xf32, #tpu.memory_space<vmem>>, vector<2x128xf32>
    tpu.vector_store %arg12[%c0_50, %c128], %92 {strides = array<i32>} : memref<2x256xf32, #tpu.memory_space<vmem>>, vector<2x128xf32>,
    return
  }
  func.func @transform_0(%arg0: i32) -> (i32, i32) {
    %c0_i32 = arith.constant 0 : i32
    %c0_i32_0 = arith.constant 0 : i32
    return %arg0, %c0_i32 : i32, i32
  }
  func.func @transform_1(%arg0: i32) -> (i32, i32) {
    %c0_i32 = arith.constant 0 : i32
    %c0_i32_0 = arith.constant 0 : i32
    %c0_i32_1 = arith.constant 0 : i32
    return %c0_i32, %c0_i32_0 : i32, i32
  }
  func.func @transform_2(%arg0: i32) -> (i32, i32) {
    %c0_i32 = arith.constant 0 : i32
    %c0_i32_0 = arith.constant 0 : i32
    %c0_i32_1 = arith.constant 0 : i32
    return %c0_i32, %c0_i32_0 : i32, i32
  }
  func.func @transform_3(%arg0: i32) -> (i32, i32) {
    %c0_i32 = arith.constant 0 : i32
    %c0_i32_0 = arith.constant 0 : i32
    %c0_i32_1 = arith.constant 0 : i32
    return %c0_i32, %c0_i32_0 : i32, i32
  }
  func.func @transform_4(%arg0: i32) -> (i32, i32) {
    %c0_i32 = arith.constant 0 : i32
    %c0_i32_0 = arith.constant 0 : i32
    %c0_i32_1 = arith.constant 0 : i32
    return %c0_i32, %c0_i32_0 : i32, i32
  }
  func.func @transform_5(%arg0: i32) -> (i32, i32) {
    %c0_i32 = arith.constant 0 : i32
    %c0_i32_0 = arith.constant 0 : i32
    %c0_i32_1 = arith.constant 0 : i32
    return %c0_i32, %c0_i32_0 : i32, i32
  }
  func.func @transform_6(%arg0: i32) -> (i32, i32) {
    %c0_i32 = arith.constant 0 : i32
    %c0_i32_0 = arith.constant 0 : i32
    %c0_i32_1 = arith.constant 0 : i32
    return %c0_i32, %c0_i32_0 : i32, i32
  }
  func.func @transform_7(%arg0: i32) -> (i32, i32) {
    %c0_i32 = arith.constant 0 : i32
    %c0_i32_0 = arith.constant 0 : i32
    %c0_i32_1 = arith.constant 0 : i32
    return %c0_i32, %c0_i32_0 : i32, i32
  }
  func.func @transform_8(%arg0: i32) -> (i32, i32) {
    %c0_i32 = arith.constant 0 : i32
    %c0_i32_0 = arith.constant 0 : i32
    %c0_i32_1 = arith.constant 0 : i32
    return %c0_i32, %c0_i32_0 : i32, i32
  }
  func.func @transform_9(%arg0: i32) -> (i32, i32) {
    %c0_i32 = arith.constant 0 : i32
    %c0_i32_0 = arith.constant 0 : i32
    %c0_i32_1 = arith.constant 0 : i32
    return %c0_i32, %c0_i32_0 : i32, i32
  }
  func.func @transform_10(%arg0: i32) -> (i32, i32) {
    %c0_i32 = arith.constant 0 : i32
    %c0_i32_0 = arith.constant 0 : i32
    %c0_i32_1 = arith.constant 0 : i32
    return %c0_i32, %c0_i32_0 : i32, i32
  }
  func.func @transform_11(%arg0: i32) -> (i32, i32) {
    %c0_i32 = arith.constant 0 : i32
    %c0_i32_0 = arith.constant 0 : i32
    return %arg0, %c0_i32 : i32, i32
  }
}

</mosaic_0001>

<llo_original>
// kernel: latent_encoder_forward.1
$region0: #{latent_encoder_forward.1}
  #allocation0 [shape = 'u32[]', space=smem, size = 0x4, offset = 0x4, fixed_abs, tag = 'smem constant byte address 0x4 - core index']
  #allocation1 [shape = 'u32[72,128]{1,0:T(1,128)}', space=vmem, size = 0x9000, scoped, tag = 'internal scratch']
  %s0 = inlined_call_operand.vmem [shape: f32[16,4], index: 0, kind: input, shape index: {}]
  %s1 = inlined_call_operand.vmem [shape: f32[4,128], index: 1, kind: input, shape index: {}]
  %s2 = inlined_call_operand.vmem [shape: f32[1,128], index: 2, kind: input, shape index: {}]
  %s3 = inlined_call_operand.vmem [shape: f32[128,128], index: 3, kind: input, shape index: {}]
  %s4 = inlined_call_operand.vmem [shape: f32[1,128], index: 4, kind: input, shape index: {}]
  %s5 = inlined_call_operand.vmem [shape: f32[128,128], index: 5, kind: input, shape index: {}]
  %s6 = inlined_call_operand.vmem [shape: f32[1,128], index: 6, kind: input, shape index: {}]
  %s7 = inlined_call_operand.vmem [shape: f32[128,128], index: 7, kind: input, shape index: {}]
  %s8 = inlined_call_operand.vmem [shape: f32[1,128], index: 8, kind: input, shape index: {}]
  %s9 = inlined_call_operand.vmem [shape: f32[128,256], index: 9, kind: input, shape index: {}]
  %s10 = inlined_call_operand.vmem [shape: f32[1,256], index: 10, kind: input, shape index: {}]
  %s11 = inlined_call_operand.vmem [shape: f32[2,256], index: 11, kind: output, shape index: {}]
  %s12 = sld [smem:[#allocation0]]
  $region54: #{latent_encoder_forward.1} parent=0
    _
  %s14 = ssub.s32 1, %s12
  %s15 = scalar_select 0, %s14, %s12
  // Predicated region
  $region2: #{latent_encoder_forward.1} parent=0 // pred_check
    _
  $region3: #{latent_encoder_forward.1} parent=0 // pred_check_branch
    %17 = sbr.rel (0) target = $region5
  $region4: #{latent_encoder_forward.1} parent=0 // pred_region
    _
  $region5: #{latent_encoder_forward.1} parent=0 // pred_fallthru
    _
  // Predicated region
  $region6: #{latent_encoder_forward.1} parent=0 // pred_check
    _
  $region7: #{latent_encoder_forward.1} parent=0 // pred_check_branch
    %19 = sbr.rel (0) target = $region9
  $region8: #{latent_encoder_forward.1} parent=0 // pred_region
    _
  $region9: #{latent_encoder_forward.1} parent=0 // pred_fallthru
    _
  // Predicated region
  $region10: #{latent_encoder_forward.1} parent=0 // pred_check
    _
  $region11: #{latent_encoder_forward.1} parent=0 // pred_check_branch
    %21 = sbr.rel (0) target = $region13
  $region12: #{latent_encoder_forward.1} parent=0 // pred_region
    _
  $region13: #{latent_encoder_forward.1} parent=0 // pred_fallthru
    _
  // Predicated region
  $region14: #{latent_encoder_forward.1} parent=0 // pred_check
    _
  $region15: #{latent_encoder_forward.1} parent=0 // pred_check_branch
    %23 = sbr.rel (0) target = $region17
  $region16: #{latent_encoder_forward.1} parent=0 // pred_region
    _
  $region17: #{latent_encoder_forward.1} parent=0 // pred_fallthru
    _
  // Predicated region
  $region18: #{latent_encoder_forward.1} parent=0 // pred_check
    _
  $region19: #{latent_encoder_forward.1} parent=0 // pred_check_branch
    %25 = sbr.rel (0) target = $region21
  $region20: #{latent_encoder_forward.1} parent=0 // pred_region
    _
  $region21: #{latent_encoder_forward.1} parent=0 // pred_fallthru
    _
  // Predicated region
  $region22: #{latent_encoder_forward.1} parent=0 // pred_check
    _
  $region23: #{latent_encoder_forward.1} parent=0 // pred_check_branch
    %27 = sbr.rel (0) target = $region25
  $region24: #{latent_encoder_forward.1} parent=0 // pred_region
    _
  $region25: #{latent_encoder_forward.1} parent=0 // pred_fallthru
    _
  // Predicated region
  $region26: #{latent_encoder_forward.1} parent=0 // pred_check
    _
  $region27: #{latent_encoder_forward.1} parent=0 // pred_check_branch
    %29 = sbr.rel (0) target = $region29
  $region28: #{latent_encoder_forward.1} parent=0 // pred_region
    _
  $region29: #{latent_encoder_forward.1} parent=0 // pred_fallthru
    _
  // Predicated region
  $region30: #{latent_encoder_forward.1} parent=0 // pred_check
    _
  $region31: #{latent_encoder_forward.1} parent=0 // pred_check_branch
    %31 = sbr.rel (0) target = $region33
  $region32: #{latent_encoder_forward.1} parent=0 // pred_region
    _
  $region33: #{latent_encoder_forward.1} parent=0 // pred_fallthru
    _
  // Predicated region
  $region34: #{latent_encoder_forward.1} parent=0 // pred_check
    _
  $region35: #{latent_encoder_forward.1} parent=0 // pred_check_branch
    %33 = sbr.rel (0) target = $region37
  $region36: #{latent_encoder_forward.1} parent=0 // pred_region
    _
  $region37: #{latent_encoder_forward.1} parent=0 // pred_fallthru
    _
  // Predicated region
  $region38: #{latent_encoder_forward.1} parent=0 // pred_check
    _
  $region39: #{latent_encoder_forward.1} parent=0 // pred_check_branch
    %35 = sbr.rel (0) target = $region41
  $region40: #{latent_encoder_forward.1} parent=0 // pred_region
    _
  $region41: #{latent_encoder_forward.1} parent=0 // pred_fallthru
    _
  // Predicated region
  $region42: #{latent_encoder_forward.1} parent=0 // pred_check
    _
  $region43: #{latent_encoder_forward.1} parent=0 // pred_check_branch
    %37 = sbr.rel (0) target = $region45
  $region44: #{latent_encoder_forward.1} parent=0 // pred_region
    _
  $region45: #{latent_encoder_forward.1} parent=0 // pred_fallthru
    _
  %v38 = vld [vmem:[%s0] sm:$0xff]
  %v39 = vld [vmem:[%s0 + $0x8] sm:$0xff]
  %v40 = vld [vmem:[%s1] sm:$0xf]
  %v41 = vld [vmem:[%s2] sm:$0x1]
  %v43 = vperm.slane %v41, 0
  %vm45 = vcmask 31744
  %v47 = vsel %vm45, %v38, 0
  %v50 = vsel %vm45, %v39, 0
  %vm52 = vcmask 1043456
  %v54 = vsel %vm52, %v40, 0
  %56 = vmatpush.msra.mxu0 0.0
  %57 = vmatpush.msra.mxu0 0.0
  %58 = vmatpush.msra.mxu0 0.0
  %59 = vmatpush.msra.mxu0 0.0
  %60 = vmatpush.msra.mxu0 0.0
  %61 = vmatpush.msra.mxu0 0.0
  %62 = vmatpush.msra.mxu0 0.0
  %63 = vmatpush.msra.mxu0 0.0
  %64 = vmatpush.msra.mxu0 0.0
  %65 = vmatpush.msra.mxu0 0.0
  %66 = vmatpush.msra.mxu0 0.0
  %67 = vmatpush.msra.mxu0 0.0
  %68 = vmatpush.msra.mxu0 0.0
  %69 = vmatpush.msra.mxu0 0.0
  %70 = vmatpush.msra.mxu0 0.0
  %71 = vmatpush.msra.mxu0 %v54
  %72 = vmatmul.f32.gmra.mxu0 %v47
  %v73 = vpop.f32.mrf.mxu0
  %v74 = vadd.f32 %v43, %v73
  %75 = vmatmul.f32.gmra.mxu0 %v50
  %v76 = vpop.f32.mrf.mxu0
  %v77 = vadd.f32 %v43, %v76
  %78 = vdwg.mxu0
  %79 = vadd.xlane.f32.xlu0 %v74
  %v80 = vpop.xlane.xlu0 %79
  %81 = vadd.xlane.f32.xlu0 %v77
  %v82 = vpop.xlane.xlu0 %81
  %v83 = vmul.f32 %v80, 0.03125
  %v84 = vmul.f32 %v82, 0.03125
  %v85 = vsub.f32 %v74, %v83
  %v86 = vsub.f32 %v77, %v84
  %v87 = vmul.f32 %v85, %v85
  %v88 = vmul.f32 %v86, %v86
  %89 = vadd.xlane.f32.xlu0 %v87
  %v90 = vpop.xlane.xlu0 %89
  %91 = vadd.xlane.f32.xlu0 %v88
  %v92 = vpop.xlane.xlu0 %91
  %v93 = vmul.f32 %v83, %v83
  %v94 = vmul.f32 %v84, %v84
  %v95 = vmul.f32 %v93, 96.0
  %v96 = vmul.f32 %v94, 96.0
  %v97 = vsub.f32 %v90, %v95
  %v98 = vsub.f32 %v92, %v96
  %v99 = vmul.f32 %v97, 0.03125
  %v100 = vmul.f32 %v98, 0.03125
  %v101 = vmax.f32 %v99, 0.0
  %v102 = vmax.f32 %v100, 0.0
  %v103 = vadd.f32 %v101, 1e-05
  %v104 = vadd.f32 %v102, 1e-05
  %v105 = vrsqrt.pop %v103
  %v106 = vmul.f32 %v105, %v103
  %v107 = vmul.f32 %v106, %v105
  %v108 = vmul.f32 0.5, %v107
  %v109 = vsub.f32 1.5, %v108
  %v110 = vmul.f32 %v105, %v109
  %vm111 = vweird.f32 %v103
  %vm112 = vweird.f32 %v105
  %vm113 = vmor %vm111, %vm112
  %v114 = vsel %vm113, %v105, %v110
  %v115 = vrsqrt.pop %v104
  %v116 = vmul.f32 %v115, %v104
  %v117 = vmul.f32 %v116, %v115
  %v118 = vmul.f32 0.5, %v117
  %v119 = vsub.f32 1.5, %v118
  %v120 = vmul.f32 %v115, %v119
  %vm121 = vweird.f32 %v104
  %vm122 = vweird.f32 %v115
  %vm123 = vmor %vm121, %vm122
  %v124 = vsel %vm123, %v115, %v120
  %v125 = vmul.f32 %v85, %v114
  %v126 = vmul.f32 %v86, %v124
  %v127 = vmax.f32 %v125, 0.0
  %v128 = vmax.f32 %v126, 0.0
  %v129 = vld [vmem:[%s3] sm:$0xff]
  %v130 = vld [vmem:[%s3 + $0x8] sm:$0xff]
  %v131 = vld [vmem:[%s3 + $0x10] sm:$0xff]
  %v132 = vld [vmem:[%s3 + $0x18] sm:$0xff]
  %v133 = vld [vmem:[%s3 + $0x20] sm:$0xff]
  %v134 = vld [vmem:[%s3 + $0x28] sm:$0xff]
  %v135 = vld [vmem:[%s3 + $0x30] sm:$0xff]
  %v136 = vld [vmem:[%s3 + $0x38] sm:$0xff]
  %v137 = vld [vmem:[%s3 + $0x40] sm:$0xff]
  %v138 = vld [vmem:[%s3 + $0x48] sm:$0xff]
  %v139 = vld [vmem:[%s3 + $0x50] sm:$0xff]
  %v140 = vld [vmem:[%s3 + $0x58] sm:$0xff]
  %v141 = vld [vmem:[%s3 + $0x60] sm:$0xff]
  %v142 = vld [vmem:[%s3 + $0x68] sm:$0xff]
  %v143 = vld [vmem:[%s3 + $0x70] sm:$0xff]
  %v144 = vld [vmem:[%s3 + $0x78] sm:$0xff]
  %v145 = vld [vmem:[%s4] sm:$0x1]
  %v147 = vperm.slane %v145, 0
  %149 = vmatpush.msra.mxu0 %v144
  %150 = vmatpush.msra.mxu0 %v143
  %151 = vmatpush.msra.mxu0 %v142
  %152 = vmatpush.msra.mxu0 %v141
  %153 = vmatpush.msra.mxu0 %v140
  %154 = vmatpush.msra.mxu0 %v139
  %155 = vmatpush.msra.mxu0 %v138
  %156 = vmatpush.msra.mxu0 %v137
  %157 = vmatpush.msra.mxu0 %v136
  %158 = vmatpush.msra.mxu0 %v135
  %159 = vmatpush.msra.mxu0 %v134
  %160 = vmatpush.msra.mxu0 %v133
  %161 = vmatpush.msra.mxu0 %v132
  %162 = vmatpush.msra.mxu0 %v131
  %163 = vmatpush.msra.mxu0 %v130
  %164 = vmatpush.msra.mxu0 %v129
  %165 = vmatmul.f32.gmra.mxu0 %v127
  %v166 = vpop.f32.mrf.mxu0
  %v167 = vadd.f32 %v147, %v166
  %168 = vmatmul.f32.gmra.mxu0 %v128
  %v169 = vpop.f32.mrf.mxu0
  %v170 = vadd.f32 %v147, %v169
  %171 = vdwg.mxu0
  %172 = vadd.xlane.f32.xlu0 %v167
  %v173 = vpop.xlane.xlu0 %172
  %174 = vadd.xlane.f32.xlu0 %v170
  %v175 = vpop.xlane.xlu0 %174
  %v176 = vmul.f32 %v173, 0.03125
  %v177 = vmul.f32 %v175, 0.03125
  %v178 = vsub.f32 %v167, %v176
  %v179 = vsub.f32 %v170, %v177
  %v180 = vmul.f32 %v178, %v178
  %v181 = vmul.f32 %v179, %v179
  %182 = vadd.xlane.f32.xlu0 %v180
  %v183 = vpop.xlane.xlu0 %182
  %184 = vadd.xlane.f32.xlu0 %v181
  %v185 = vpop.xlane.xlu0 %184
  %v186 = vmul.f32 %v176, %v176
  %v187 = vmul.f32 %v177, %v177
  %v188 = vmul.f32 %v186, 96.0
  %v189 = vmul.f32 %v187, 96.0
  %v190 = vsub.f32 %v183, %v188
  %v191 = vsub.f32 %v185, %v189
  %v192 = vmul.f32 %v190, 0.03125
  %v193 = vmul.f32 %v191, 0.03125
  %v194 = vmax.f32 %v192, 0.0
  %v195 = vmax.f32 %v193, 0.0
  %v196 = vadd.f32 %v194, 1e-05
  %v197 = vadd.f32 %v195, 1e-05
  %v198 = vrsqrt.pop %v196
  %v199 = vmul.f32 %v198, %v196
  %v200 = vmul.f32 %v199, %v198
  %v201 = vmul.f32 0.5, %v200
  %v202 = vsub.f32 1.5, %v201
  %v203 = vmul.f32 %v198, %v202
  %vm204 = vweird.f32 %v196
  %vm205 = vweird.f32 %v198
  %vm206 = vmor %vm204, %vm205
  %v207 = vsel %vm206, %v198, %v203
  %v208 = vrsqrt.pop %v197
  %v209 = vmul.f32 %v208, %v197
  %v210 = vmul.f32 %v209, %v208
  %v211 = vmul.f32 0.5, %v210
  %v212 = vsub.f32 1.5, %v211
  %v213 = vmul.f32 %v208, %v212
  %vm214 = vweird.f32 %v197
  %vm215 = vweird.f32 %v208
  %vm216 = vmor %vm214, %vm215
  %v217 = vsel %vm216, %v208, %v213
  %v218 = vmul.f32 %v178, %v207
  %v219 = vmul.f32 %v179, %v217
  %v220 = vmax.f32 %v218, 0.0
  %v221 = vmax.f32 %v219, 0.0
  %v222 = vld [vmem:[%s5] sm:$0xff]
  %v223 = vld [vmem:[%s5 + $0x8] sm:$0xff]
  %v224 = vld [vmem:[%s5 + $0x10] sm:$0xff]
  %v225 = vld [vmem:[%s5 + $0x18] sm:$0xff]
  %v226 = vld [vmem:[%s5 + $0x20] sm:$0xff]
  %v227 = vld [vmem:[%s5 + $0x28] sm:$0xff]
  %v228 = vld [vmem:[%s5 + $0x30] sm:$0xff]
  %v229 = vld [vmem:[%s5 + $0x38] sm:$0xff]
  %v230 = vld [vmem:[%s5 + $0x40] sm:$0xff]
  %v231 = vld [vmem:[%s5 + $0x48] sm:$0xff]
  %v232 = vld [vmem:[%s5 + $0x50] sm:$0xff]
  %v233 = vld [vmem:[%s5 + $0x58] sm:$0xff]
  %v234 = vld [vmem:[%s5 + $0x60] sm:$0xff]
  %v235 = vld [vmem:[%s5 + $0x68] sm:$0xff]
  %v236 = vld [vmem:[%s5 + $0x70] sm:$0xff]
  %v237 = vld [vmem:[%s5 + $0x78] sm:$0xff]
  %v238 = vld [vmem:[%s6] sm:$0x1]
  %v240 = vperm.slane %v238, 0
  %242 = vmatpush.msra.mxu0 %v237
  %243 = vmatpush.msra.mxu0 %v236
  %244 = vmatpush.msra.mxu0 %v235
  %245 = vmatpush.msra.mxu0 %v234
  %246 = vmatpush.msra.mxu0 %v233
  %247 = vmatpush.msra.mxu0 %v232
  %248 = vmatpush.msra.mxu0 %v231
  %249 = vmatpush.msra.mxu0 %v230
  %250 = vmatpush.msra.mxu0 %v229
  %251 = vmatpush.msra.mxu0 %v228
  %252 = vmatpush.msra.mxu0 %v227
  %253 = vmatpush.msra.mxu0 %v226
  %254 = vmatpush.msra.mxu0 %v225
  %255 = vmatpush.msra.mxu0 %v224
  %256 = vmatpush.msra.mxu0 %v223
  %257 = vmatpush.msra.mxu0 %v222
  %258 = vmatmul.f32.gmra.mxu0 %v220
  %v259 = vpop.f32.mrf.mxu0
  %v260 = vadd.f32 %v240, %v259
  %261 = vmatmul.f32.gmra.mxu0 %v221
  %v262 = vpop.f32.mrf.mxu0
  %v263 = vadd.f32 %v240, %v262
  %264 = vdwg.mxu0
  %v265 = vrot.slane %v260, 4
  %v266 = vadd.f32 %v260, %v265
  %v267 = vrot.slane %v266, 2
  %v268 = vadd.f32 %v266, %v267
  %v269 = vrot.slane %v268, 1
  %v270 = vadd.f32 %v268, %v269
  %v271 = vrot.slane %v263, 4
  %v272 = vadd.f32 %v263, %v271
  %v273 = vrot.slane %v272, 2
  %v274 = vadd.f32 %v272, %v273
  %v275 = vrot.slane %v274, 1
  %v276 = vadd.f32 %v274, %v275
  %v277 = vrcp.pop 8.0
  %v278 = vmul.f32 8.0, %v277
  %v279 = vsub.f32 1.0, %v278
  %v280 = vmul.f32 %v277, %v279
  %v281 = vadd.f32 %v277, %v280
  %vm282 = vweird.f32 %v277
  %v283 = vsel %vm282, %v277, %v281
  %v284 = vmul.f32 %v270, %v283
  %v285 = vmul.f32 %v276, %v283
  %v286 = vld [vmem:[%s7] sm:$0xff]
  %v287 = vld [vmem:[%s7 + $0x8] sm:$0xff]
  %v288 = vld [vmem:[%s7 + $0x10] sm:$0xff]
  %v289 = vld [vmem:[%s7 + $0x18] sm:$0xff]
  %v290 = vld [vmem:[%s7 + $0x20] sm:$0xff]
  %v291 = vld [vmem:[%s7 + $0x28] sm:$0xff]
  %v292 = vld [vmem:[%s7 + $0x30] sm:$0xff]
  %v293 = vld [vmem:[%s7 + $0x38] sm:$0xff]
  %v294 = vld [vmem:[%s7 + $0x40] sm:$0xff]
  %v295 = vld [vmem:[%s7 + $0x48] sm:$0xff]
  %v296 = vld [vmem:[%s7 + $0x50] sm:$0xff]
  %v297 = vld [vmem:[%s7 + $0x58] sm:$0xff]
  %v298 = vld [vmem:[%s7 + $0x60] sm:$0xff]
  %v299 = vld [vmem:[%s7 + $0x68] sm:$0xff]
  %v300 = vld [vmem:[%s7 + $0x70] sm:$0xff]
  %v301 = vld [vmem:[%s7 + $0x78] sm:$0xff]
  %v302 = vld [vmem:[%s8] sm:$0x1]
  %v304 = vperm.slane %v302, 0
  %vm308 = vcmask 1041409
  %v309 = vsel %vm308, %v285, %v284
  %311 = vmatpush.msra.mxu0 %v301
  %312 = vmatpush.msra.mxu0 %v300
  %313 = vmatpush.msra.mxu0 %v299
  %314 = vmatpush.msra.mxu0 %v298
  %315 = vmatpush.msra.mxu0 %v297
  %316 = vmatpush.msra.mxu0 %v296
  %317 = vmatpush.msra.mxu0 %v295
  %318 = vmatpush.msra.mxu0 %v294
  %319 = vmatpush.msra.mxu0 %v293
  %320 = vmatpush.msra.mxu0 %v292
  %321 = vmatpush.msra.mxu0 %v291
  %322 = vmatpush.msra.mxu0 %v290
  %323 = vmatpush.msra.mxu0 %v289
  %324 = vmatpush.msra.mxu0 %v288
  %325 = vmatpush.msra.mxu0 %v287
  %326 = vmatpush.msra.mxu0 %v286
  %327 = vmatmul.f32.gmra.mxu0 %v309
  %v328 = vpop.f32.mrf.mxu0
  %v329 = vadd.f32 %v304, %v328
  %330 = vdwg.mxu0
  %v331 = vmax.f32 %v329, 0.0
  %v332 = vld [vmem:[%s9] sm:$0xff]
  %v333 = vld [vmem:[%s9 + $0x8] sm:$0xff]
  %v334 = vld [vmem:[%s9 + $0x10] sm:$0xff]
  %v335 = vld [vmem:[%s9 + $0x18] sm:$0xff]
  %v336 = vld [vmem:[%s9 + $0x20] sm:$0xff]
  %v337 = vld [vmem:[%s9 + $0x28] sm:$0xff]
  %v338 = vld [vmem:[%s9 + $0x30] sm:$0xff]
  %v339 = vld [vmem:[%s9 + $0x38] sm:$0xff]
  %v340 = vld [vmem:[%s9 + $0x40] sm:$0xff]
  %v341 = vld [vmem:[%s9 + $0x48] sm:$0xff]
  %v342 = vld [vmem:[%s9 + $0x50] sm:$0xff]
  %v343 = vld [vmem:[%s9 + $0x58] sm:$0xff]
  %v344 = vld [vmem:[%s9 + $0x60] sm:$0xff]
  %v345 = vld [vmem:[%s9 + $0x68] sm:$0xff]
  %v346 = vld [vmem:[%s9 + $0x70] sm:$0xff]
  %v347 = vld [vmem:[%s9 + $0x78] sm:$0xff]
  %v348 = vld [vmem:[%s9 + $0x80] sm:$0xff]
  %v349 = vld [vmem:[%s9 + $0x88] sm:$0xff]
  %v350 = vld [vmem:[%s9 + $0x90] sm:$0xff]
  %v351 = vld [vmem:[%s9 + $0x98] sm:$0xff]
  %v352 = vld [vmem:[%s9 + $0xa0] sm:$0xff]
  %v353 = vld [vmem:[%s9 + $0xa8] sm:$0xff]
  %v354 = vld [vmem:[%s9 + $0xb0] sm:$0xff]
  %v355 = vld [vmem:[%s9 + $0xb8] sm:$0xff]
  %v356 = vld [vmem:[%s9 + $0xc0] sm:$0xff]
  %v357 = vld [vmem:[%s9 + $0xc8] sm:$0xff]
  %v358 = vld [vmem:[%s9 + $0xd0] sm:$0xff]
  %v359 = vld [vmem:[%s9 + $0xd8] sm:$0xff]
  %v360 = vld [vmem:[%s9 + $0xe0] sm:$0xff]
  %v361 = vld [vmem:[%s9 + $0xe8] sm:$0xff]
  %v362 = vld [vmem:[%s9 + $0xf0] sm:$0xff]
  %v363 = vld [vmem:[%s9 + $0xf8] sm:$0xff]
  %v364 = vld [vmem:[%s10] sm:$0x3]
  %v366 = vperm.slane %v364, 0
  %v367 = vperm.slane %v364, 1
  %370 = vmatpush.msra.mxu0 %v362
  %371 = vmatpush.msra.mxu0 %v360
  %372 = vmatpush.msra.mxu0 %v358
  %373 = vmatpush.msra.mxu0 %v356
  %374 = vmatpush.msra.mxu0 %v354
  %375 = vmatpush.msra.mxu0 %v352
  %376 = vmatpush.msra.mxu0 %v350
  %377 = vmatpush.msra.mxu0 %v348
  %378 = vmatpush.msra.mxu0 %v346
  %379 = vmatpush.msra.mxu0 %v344
  %380 = vmatpush.msra.mxu0 %v342
  %381 = vmatpush.msra.mxu0 %v340
  %382 = vmatpush.msra.mxu0 %v338
  %383 = vmatpush.msra.mxu0 %v336
  %384 = vmatpush.msra.mxu0 %v334
  %385 = vmatpush.msra.mxu0 %v332
  %386 = vmatmul.f32.gmra.mxu0 %v331
  %v387 = vpop.f32.mrf.mxu0
  %v388 = vadd.f32 %v366, %v387
  %389 = vdwg.mxu0
  %390 = vmatpush.msra.mxu0 %v363
  %391 = vmatpush.msra.mxu0 %v361
  %392 = vmatpush.msra.mxu0 %v359
  %393 = vmatpush.msra.mxu0 %v357
  %394 = vmatpush.msra.mxu0 %v355
  %395 = vmatpush.msra.mxu0 %v353
  %396 = vmatpush.msra.mxu0 %v351
  %397 = vmatpush.msra.mxu0 %v349
  %398 = vmatpush.msra.mxu0 %v347
  %399 = vmatpush.msra.mxu0 %v345
  %400 = vmatpush.msra.mxu0 %v343
  %401 = vmatpush.msra.mxu0 %v341
  %402 = vmatpush.msra.mxu0 %v339
  %403 = vmatpush.msra.mxu0 %v337
  %404 = vmatpush.msra.mxu0 %v335
  %405 = vmatpush.msra.mxu0 %v333
  %406 = vmatmul.f32.gmra.mxu0 %v331
  %v407 = vpop.f32.mrf.mxu0
  %v408 = vadd.f32 %v367, %v407
  %409 = vdwg.mxu0
  %v410 = vmul.f32 %v408, 0.5
  %v411 = vxor.u32 %v410, 2147483648
  %v412 = vmul.f32 %v411, 1.442695
  %v413 = vpow.pop %v412
  %v414 = vadd.f32 %v413, 1.0
  %v415 = vrcp.pop %v414
  %v416 = vmul.f32 %v414, %v415
  %v417 = vsub.f32 1.0, %v416
  %v418 = vmul.f32 %v415, %v417
  %v419 = vadd.f32 %v415, %v418
  %vm420 = vweird.f32 %v414
  %vm421 = vweird.f32 %v415
  %vm422 = vmor %vm420, %vm421
  %v423 = vsel %vm422, %v415, %v419
  %v424 = vand.u32 2147483647, %v414
  %vm425 = vcmp.eq.f32.partialorder %v424, 8.507059e+37
  %v426 = vand.u32 %v414, 2147483648
  %v427 = vor.u32 1.1754944e-38, %v426
  %v428 = vsel %vm425, %v427, %v423
  %v429 = vmul.f32 1.0, %v428
  %v430 = vmul.f32 %v429, 0.99
  %v431 = vadd.f32 %v430, 0.01
  %432 = vst [vmem:[%s11] sm:$0x3] %v388
  %433 = vst [vmem:[%s11 + $0x2] sm:$0x3] %v431
  // Predicated region
  $region46: #{latent_encoder_forward.1} parent=0 // pred_check
    _
  $region47: #{latent_encoder_forward.1} parent=0 // pred_check_branch
    %435 = sbr.rel (0) target = $region49
  $region48: #{latent_encoder_forward.1} parent=0 // pred_region
    _
  $region49: #{latent_encoder_forward.1} parent=0 // pred_fallthru
    _
  // Predicated region
  $region50: #{latent_encoder_forward.1} parent=0 // pred_check
    _
  $region51: #{latent_encoder_forward.1} parent=0 // pred_check_branch
    %437 = sbr.rel (0) target = $region53
  $region52: #{latent_encoder_forward.1} parent=0 // pred_region
    _
  $region53: #{latent_encoder_forward.1} parent=0 // pred_fallthru
    _

</llo_original>
